<compile_context>
chip_gen: v5e
topology: v5e:2x2
jax: 0.10.0
libtpu: 0.0.40
codegen_flags: <defaults>
</compile_context>

<pallas_src>
import jax
import jax.numpy as jnp
from jax import lax
from jax.experimental import pallas as pl
from jax.experimental.pallas import tpu as pltpu


_DMA_RING_DEPTH = 16        # in-flight row DMAs for Path B
_PER_ROW_DMA_US = 0.4       # amortized per-row HBM DMA overhead with a deep ring
_DEFAULT_TILE_ROWS = 512    # batch rows per grid step (out tile ~256 KiB f32)


def _round_up(x: int, m: int) -> int:
    return ((x + m - 1) // m) * m


def _device_vmem_and_bw():
    """(per-core VMEM capacity bytes, approx HBM bytes/s) with safe fallbacks."""
    vmem_cap = 64 * 1024 * 1024                       # conservative (v7x per-TC)
    try:
        vmem_cap = int(pltpu.get_tpu_info().vmem_capacity_bytes)
    except Exception:
        pass
    # Rough generation guess keyed off VMEM size: 64 MiB/TC -> v7x (~3.2 TB/s);
    # 128 MiB -> v5e/v6e (use a conservative 1.0 TB/s so small batches on slow
    # HBM still prefer the per-row DMA path).
    hbm_bw = 3.2e12 if vmem_cap <= 64 * 1024 * 1024 else 1.0e12
    return vmem_cap, hbm_bw


# ---------------------------------------------------------------------------
# Path A: table staged once into single-buffered VMEM scratch, 8-row gathers.
# ---------------------------------------------------------------------------
def _resident_gather_kernel(ids_ref, emb_hbm, out_ref, table, copy_sem):
    tb = out_ref.shape[0]
    base = pl.program_id(0) * tb

    # Stage the whole table HBM -> VMEM once.  Grid axis is "arbitrary"
    # (sequential on one core), so step 0 runs first and `table` persists
    # across all later grid steps.
    @pl.when(pl.program_id(0) == 0)
    def _():
        cp = pltpu.make_async_copy(emb_hbm, table, copy_sem)
        cp.start()
        cp.wait()

    n_groups = tb // 8

    def body(g, carry):
        r0 = pl.multiple_of(g * 8, 8)
        # 8 scalar ids from SMEM, 8 dynamic-sublane loads from the resident
        # table, then ONE dense (8, Dp) store (no single-sublane masked stores).
        rows = [ids_ref[base + r0 + j] for j in range(8)]
        block = jnp.concatenate(
            [table[pl.ds(rows[j], 1), :] for j in range(8)], axis=0)
        out_ref[pl.ds(r0, 8), :] = block
        return carry

    lax.fori_loop(0, n_groups, body, 0, unroll=min(2, n_groups))


def _gather_resident(emb, ids, tb, num_tiles, vmem_limit):
    n_pad, d_p = emb.shape
    b_pad = num_tiles * tb
    grid_spec = pltpu.PrefetchScalarGridSpec(
        num_scalar_prefetch=1,                          # `ids` -> SMEM
        grid=(num_tiles,),
        in_specs=[pl.BlockSpec(memory_space=pl.ANY)],   # table in HBM; staged manually
        out_specs=pl.BlockSpec((tb, d_p), lambda i, ids: (i, 0)),
        scratch_shapes=[
            pltpu.VMEM((n_pad, d_p), emb.dtype),        # single-buffered table copy
            pltpu.SemaphoreType.DMA(()),
        ],
    )
    return pl.pallas_call(
        _resident_gather_kernel,
        out_shape=jax.ShapeDtypeStruct((b_pad, d_p), emb.dtype),
        grid_spec=grid_spec,
        compiler_params=pltpu.CompilerParams(
            # "arbitrary": needed so step-0 staging is observed by every later
            # step; also avoids paying the table staging DMA once per
            # TensorCore on the 2-TC v7x part.
            dimension_semantics=("arbitrary",),
            vmem_limit_bytes=vmem_limit,
        ),
    )(ids, emb)


# ---------------------------------------------------------------------------
# Path B: table in HBM, manual per-row DMA gather with a deep semaphore ring.
# ---------------------------------------------------------------------------
def _dma_gather_kernel(ids_ref, emb_hbm, out_ref, sems):
    tb = out_ref.shape[0]
    k = sems.shape[0]
    base = pl.program_id(0) * tb

    def issue(t, row, slot):
        pltpu.make_async_copy(
            emb_hbm.at[pl.ds(row, 1), :],
            out_ref.at[pl.ds(t, 1), :],
            sems.at[slot],
        ).start()

    # Prime the ring with the first min(tb, k) row fetches.
    for s in range(min(tb, k)):
        issue(s, ids_ref[base + s], s)

    def body(t, carry):
        slot = t % k
        nxt = t + k
        # Hoist the scalar id read ABOVE the DMA wait: wait breaks SMEM
        # sst->sld forwarding and would put this read on the critical path.
        nxt_row = ids_ref[base + jnp.minimum(nxt, tb - 1)]

        # Wait for row copy `t` (occupying `slot`).  Only the semaphore and
        # the (1, Dp) transfer size matter; both sides of the dummy descriptor
        # use the SAME padded feature width as the issued copies, so the
        # semaphore byte counts match exactly.
        pltpu.make_async_copy(
            emb_hbm.at[pl.ds(0, 1), :],
            out_ref.at[pl.ds(0, 1), :],
            sems.at[slot],
        ).wait()

        @pl.when(nxt < tb)
        def _():
            issue(nxt, nxt_row, slot)

        return carry

    lax.fori_loop(0, tb, body, 0, unroll=min(4, tb))


def _gather_dma(emb, ids, tb, num_tiles, vmem_limit):
    _, d_p = emb.shape
    b_pad = num_tiles * tb
    grid_spec = pltpu.PrefetchScalarGridSpec(
        num_scalar_prefetch=1,                          # `ids` -> SMEM
        grid=(num_tiles,),
        in_specs=[pl.BlockSpec(memory_space=pl.ANY)],   # table stays in HBM
        out_specs=pl.BlockSpec((tb, d_p), lambda i, ids: (i, 0)),
        scratch_shapes=[pltpu.SemaphoreType.DMA((_DMA_RING_DEPTH,))],
    )
    return pl.pallas_call(
        _dma_gather_kernel,
        out_shape=jax.ShapeDtypeStruct((b_pad, d_p), emb.dtype),
        grid_spec=grid_spec,
        compiler_params=pltpu.CompilerParams(
            dimension_semantics=("parallel",),
            vmem_limit_bytes=vmem_limit,
        ),
    )(ids, emb)


# ---------------------------------------------------------------------------
# Forward wrapper (semantics of Node2Vec.forward).
# ---------------------------------------------------------------------------
def node2vec_forward(embedding_weight: jax.Array, batch=None, *,
                     tile_rows: int = _DEFAULT_TILE_ROWS,
                     force_dma_gather: bool = False) -> jax.Array:
    """JAX/Pallas equivalent of Node2Vec.forward.

    embedding_weight : [num_nodes, embedding_dim]
    batch            : optional [B] integer node ids
    returns          : full table if batch is None, else [B, embedding_dim]
    """
    if batch is None:
        return embedding_weight

    num_nodes, emb_dim = embedding_weight.shape
    dtype = embedding_weight.dtype
    b = int(batch.shape[0])
    if b == 0:
        return jnp.zeros((0, emb_dim), dtype=dtype)

    # torch.nn.Embedding raises on out-of-range ids; on TPU we clamp instead of
    # letting a gather DMA go out of bounds.
    # TODO(synk): out-of-range ids are clamped, not raised (semantics differ for bad input).
    ids = jnp.clip(batch.astype(jnp.int32), 0, num_nodes - 1)

    # Sublane-dense batch tiles (multiple of 8 rows); pad the batch up to a
    # whole number of tiles (pad rows gather node 0, sliced off below).
    tb = min(_round_up(max(tile_rows, 8), 8), _round_up(b, 8))
    b_pad = _round_up(b, tb)
    if b_pad != b:
        ids = jnp.pad(ids, (0, b_pad - b))
    num_tiles = b_pad // tb

    # Lane-dense feature axis for BOTH paths (unmasked stores, full-width row
    # DMAs); no-op for the common emb_dim=128 case.
    d_p = _round_up(emb_dim, 128)
    emb = embedding_weight
    if d_p != emb_dim:
        emb = jnp.pad(emb, ((0, 0), (0, d_p - emb_dim)))

    itemsize = jnp.dtype(dtype).itemsize
    vmem_cap, hbm_bw = _device_vmem_and_bw()
    vmem_limit = (vmem_cap * 7) // 8                    # ~56 MiB v7x, ~112 MiB v5e/v6e
    resident_budget = vmem_limit - 8 * 1024 * 1024      # headroom: out tiles + scratch

    # Residency footprint uses the PADDED shapes and actual buffer counts:
    # single-buffered table scratch + double-buffered (tb, d_p) output tiles.
    n_pad = _round_up(num_nodes, 8)
    table_bytes = n_pad * d_p * itemsize
    vmem_need = table_bytes + 2 * tb * d_p * itemsize
    fits = vmem_need <= resident_budget

    # Bandwidth-aware break-even: Path A pays a one-time full-table staging DMA
    # (table_bytes / HBM_BW); Path B pays ~_PER_ROW_DMA_US per gathered row.
    staging_us = table_bytes / hbm_bw * 1e6
    rowdma_us = b * _PER_ROW_DMA_US
    use_resident = (not force_dma_gather) and fits and (
        staging_us <= rowdma_us or table_bytes <= (2 << 20))

    if use_resident:
        if n_pad != num_nodes:
            emb = jnp.pad(emb, ((0, n_pad - num_nodes), (0, 0)))
        out = _gather_resident(emb, ids, tb, num_tiles, vmem_limit)
    else:
        out = _gather_dma(emb, ids, tb, num_tiles, vmem_limit)

    return out[:b, :emb_dim]


if __name__ == "__main__":
    # Deterministic synthetic parameters (shapes implied by Node2Vec.__init__):
    #   embedding = Embedding(num_nodes, embedding_dim) -> N(0, 1) init.
    num_nodes = 64
    embedding_dim = 128
    batch_size = 8

    key = jax.random.PRNGKey(0)
    k_emb, k_batch, k_emb2 = jax.random.split(key, 3)

    embedding_weight = jax.random.normal(
        k_emb, (num_nodes, embedding_dim), dtype=jnp.float32)
    batch = jax.random.randint(
        k_batch, (batch_size,), 0, num_nodes, dtype=jnp.int32)

    ref = embedding_weight[batch]

    # Path A: VMEM-resident table (auto-selected for this small table).
    out_res = jax.block_until_ready(node2vec_forward(embedding_weight, batch))
    assert out_res.shape == (batch_size, embedding_dim)
    assert bool(jnp.allclose(out_res, ref)), "resident-path gather mismatch"

    # Path A with a ragged batch containing duplicates / boundary ids.
    batch2 = jnp.array([0, num_nodes - 1, 3, 3, 7, 0, 5, 9, 11, 2, 2, 63, 1],
                       dtype=jnp.int32)
    out2 = jax.block_until_ready(node2vec_forward(embedding_weight, batch2))
    assert bool(jnp.allclose(out2, embedding_weight[batch2])), \
        "ragged-batch gather mismatch"

    # Path B: manual DMA-gather (large-table path), forced here for coverage.
    out_dma = jax.block_until_ready(
        node2vec_forward(embedding_weight, batch, force_dma_gather=True))
    assert bool(jnp.allclose(out_dma, ref)), "DMA-path gather mismatch"

    # Non-aligned table (rows not multiple of 8, features not multiple of 128):
    # exercises the row/feature padding on both paths.
    ew2 = jax.random.normal(k_emb2, (50, 96), dtype=jnp.float32)
    batch3 = jnp.array([0, 49, 7, 7, 13, 2, 31, 48, 5, 5, 1], dtype=jnp.int32)
    out3 = jax.block_until_ready(node2vec_forward(ew2, batch3))
    assert out3.shape == (batch3.shape[0], 96)
    assert bool(jnp.allclose(out3, ew2[batch3])), "padded resident gather mismatch"
    out3d = jax.block_until_ready(
        node2vec_forward(ew2, batch3, force_dma_gather=True))
    assert bool(jnp.allclose(out3d, ew2[batch3])), "padded DMA gather mismatch"

    # batch=None path returns the full table.
    full = jax.block_until_ready(node2vec_forward(embedding_weight, None))
    assert full.shape == (num_nodes, embedding_dim)

    # TODO(synk): pos_sample/neg_sample (weighted random walks), loss() and
    # test() are training/sampling utilities, not part of forward(); not ported.
    print("KERNEL_OK")
</pallas_src>

<mosaic_0001>
module attributes {stable_mosaic.version = 11 : i64} {
  func.func @_resident_gather_kernel(%arg0: i32, %arg1: memref<8xi32, #tpu.memory_space<smem>>, %arg2: memref<64x128xf32, #tpu.memory_space<any>>, %arg3: memref<8x128xf32, #tpu.memory_space<vmem>>, %arg4: memref<64x128xf32, #tpu.memory_space<vmem>>, %arg5: memref<!tpu.dma_semaphore, #tpu.memory_space<semaphore_mem>>) attributes {dimension_semantics = [#tpu.dimension_semantics<arbitrary>], iteration_bounds = array<i64: 1>, scalar_prefetch = 1 : i64, scratch_operands = 2 : i64, tpu.core_type = #tpu.core_type<tc>, window_params = [{}, {transform_indices = @transform_1, window_bounds = array<i64: 8, 128>}]} {
    %c8_i32 = arith.constant 8 : i32
    %0 = arith.muli %arg0, %c8_i32 : i32
    %c0_i32 = arith.constant 0 : i32
    %1 = arith.cmpi eq, %arg0, %c0_i32 : i32
    %2 = arith.extui %1 : i1 to i32
    %c0_i32_0 = arith.constant 0 : i32
    %3 = arith.cmpi ne, %2, %c0_i32_0 : i32
    scf.if %3 {
      tpu.enqueue_dma source(%arg2 : memref<64x128xf32, #tpu.memory_space<any>>) target(%arg4 : memref<64x128xf32, #tpu.memory_space<vmem>>) target_semaphore(%arg5 : memref<!tpu.dma_semaphore, #tpu.memory_space<semaphore_mem>>)
      tpu.wait_dma2 semaphore(%arg5 : memref<!tpu.dma_semaphore, #tpu.memory_space<semaphore_mem>>) src(%arg2 : memref<64x128xf32, #tpu.memory_space<any>>) dst(%arg4 : memref<64x128xf32, #tpu.memory_space<vmem>>)
    } else {
    }
    %c0_i32_1 = arith.constant 0 : i32
    %c8_i32_2 = arith.constant 8 : i32
    %4 = arith.muli %c0_i32_1, %c8_i32_2 : i32
    %5 = tpu.assume_multiple %4, 8 : i32
    %6 = arith.addi %0, %5 : i32
    %c0_i32_3 = arith.constant 0 : i32
    %7 = arith.addi %6, %c0_i32_3 : i32
    %8 = arith.index_cast %7 : i32 to index
    %9 = memref.load %arg1[%8] : memref<8xi32, #tpu.memory_space<smem>>
    %10 = arith.addi %0, %5 : i32
    %c1_i32 = arith.constant 1 : i32
    %11 = arith.addi %10, %c1_i32 : i32
    %12 = arith.index_cast %11 : i32 to index
    %13 = memref.load %arg1[%12] : memref<8xi32, #tpu.memory_space<smem>>
    %14 = arith.addi %0, %5 : i32
    %c2_i32 = arith.constant 2 : i32
    %15 = arith.addi %14, %c2_i32 : i32
    %16 = arith.index_cast %15 : i32 to index
    %17 = memref.load %arg1[%16] : memref<8xi32, #tpu.memory_space<smem>>
    %18 = arith.addi %0, %5 : i32
    %c3_i32 = arith.constant 3 : i32
    %19 = arith.addi %18, %c3_i32 : i32
    %20 = arith.index_cast %19 : i32 to index
    %21 = memref.load %arg1[%20] : memref<8xi32, #tpu.memory_space<smem>>
    %22 = arith.addi %0, %5 : i32
    %c4_i32 = arith.constant 4 : i32
    %23 = arith.addi %22, %c4_i32 : i32
    %24 = arith.index_cast %23 : i32 to index
    %25 = memref.load %arg1[%24] : memref<8xi32, #tpu.memory_space<smem>>
    %26 = arith.addi %0, %5 : i32
    %c5_i32 = arith.constant 5 : i32
    %27 = arith.addi %26, %c5_i32 : i32
    %28 = arith.index_cast %27 : i32 to index
    %29 = memref.load %arg1[%28] : memref<8xi32, #tpu.memory_space<smem>>
    %30 = arith.addi %0, %5 : i32
    %c6_i32 = arith.constant 6 : i32
    %31 = arith.addi %30, %c6_i32 : i32
    %32 = arith.index_cast %31 : i32 to index
    %33 = memref.load %arg1[%32] : memref<8xi32, #tpu.memory_space<smem>>
    %34 = arith.addi %0, %5 : i32
    %c7_i32 = arith.constant 7 : i32
    %35 = arith.addi %34, %c7_i32 : i32
    %36 = arith.index_cast %35 : i32 to index
    %37 = memref.load %arg1[%36] : memref<8xi32, #tpu.memory_space<smem>>
    %38 = arith.index_cast %9 : i32 to index
    %c0 = arith.constant 0 : index
    %39 = vector.load %arg4[%38, %c0] : memref<64x128xf32, #tpu.memory_space<vmem>>, vector<1x128xf32>
    %40 = arith.index_cast %13 : i32 to index
    %c0_4 = arith.constant 0 : index
    %41 = vector.load %arg4[%40, %c0_4] : memref<64x128xf32, #tpu.memory_space<vmem>>, vector<1x128xf32>
    %42 = arith.index_cast %17 : i32 to index
    %c0_5 = arith.constant 0 : index
    %43 = vector.load %arg4[%42, %c0_5] : memref<64x128xf32, #tpu.memory_space<vmem>>, vector<1x128xf32>
    %44 = arith.index_cast %21 : i32 to index
    %c0_6 = arith.constant 0 : index
    %45 = vector.load %arg4[%44, %c0_6] : memref<64x128xf32, #tpu.memory_space<vmem>>, vector<1x128xf32>
    %46 = arith.index_cast %25 : i32 to index
    %c0_7 = arith.constant 0 : index
    %47 = vector.load %arg4[%46, %c0_7] : memref<64x128xf32, #tpu.memory_space<vmem>>, vector<1x128xf32>
    %48 = arith.index_cast %29 : i32 to index
    %c0_8 = arith.constant 0 : index
    %49 = vector.load %arg4[%48, %c0_8] : memref<64x128xf32, #tpu.memory_space<vmem>>, vector<1x128xf32>
    %50 = arith.index_cast %33 : i32 to index
    %c0_9 = arith.constant 0 : index
    %51 = vector.load %arg4[%50, %c0_9] : memref<64x128xf32, #tpu.memory_space<vmem>>, vector<1x128xf32>
    %52 = arith.index_cast %37 : i32 to index
    %c0_10 = arith.constant 0 : index
    %53 = vector.load %arg4[%52, %c0_10] : memref<64x128xf32, #tpu.memory_space<vmem>>, vector<1x128xf32>
    %54 = tpu.concatenate %39, %41, %43, %45, %47, %49, %51, %53 in 0 : vector<1x128xf32>, vector<1x128xf32>, vector<1x128xf32>, vector<1x128xf32>, vector<1x128xf32>, vector<1x128xf32>, vector<1x128xf32>, vector<1x128xf32> -> vector<8x128xf32>
    %55 = arith.index_cast %5 : i32 to index
    %c0_11 = arith.constant 0 : index
    %56 = vector.load %arg3[%55, %c0_11] : memref<8x128xf32, #tpu.memory_space<vmem>>, vector<8x128xf32>
    tpu.vector_store %arg3[%55, %c0_11], %54 {strides = array<i32>} : memref<8x128xf32, #tpu.memory_space<vmem>>, vector<8x128xf32>,
    %c1_i32_12 = arith.constant 1 : i32
    return
  }
  func.func @transform_1(%arg0: i32, %arg1: memref<8xi32, #tpu.memory_space<smem>>) -> (i32, i32) {
    %c0_i32 = arith.constant 0 : i32
    %c0_i32_0 = arith.constant 0 : i32
    return %arg0, %c0_i32 : i32, i32
  }
}

</mosaic_0001>

<llo_original>
// kernel: tpu_custom_call.1
$region0: #{tpu_custom_call.1}
  #allocation0 [shape = 'u32[]', space=smem, size = 0x4, offset = 0x4, fixed_abs, tag = 'smem constant byte address 0x4 - core index']
  #allocation1 [shape = 'u32[72,128]{1,0:T(1,128)}', space=vmem, size = 0x9000, scoped, tag = 'internal scratch']
  #allocation2 [shape = 'f32[64,128]{1,0:T(8,128)}', space=vmem, size = 0x8000, scoped, tag = 'scratch operand']
  #allocation3 [shape = 's32[1]{0}', space=sflag, size = 0x4, scoped, tag = 'scratch operand']
  #allocation4 [shape = 's32[1]{0}', space=sflag, size = 0x4, scoped, tag = 'scoped memory for tpu_custom_call.1']
  #allocation5 [shape = 'u8[512]{0}', space=smem, size = 0x200, scoped, tag = 'prefetched SMEM operand 0']
  #allocation8 [shape = 's32[]', space=sflag, size = 0x4, offset = 0, fixed_abs, tag = 'sflag constant byte address 0x0 - dummy sync flag']
  #allocation9 [shape = 's32[]', space=sflag, size = 0x4, offset = 0, fixed_abs, tag = 'sflag constant byte address 0x0 - dummy sync flag']
  #allocation10 [shape = 'u32[]', space=smem, size = 0x4, offset = 0x44, fixed_abs, tag = 'smem constant byte address 0x44 - assertion arg 0']
  #allocation11 [shape = 'u32[]', space=smem, size = 0x4, offset = 0x48, fixed_abs, tag = 'smem constant byte address 0x48 - assertion arg 1']
  %s0 = inlined_call_operand.hbm [shape: s32[8], index: 0, kind: input, shape index: {}]
  %s1 = inlined_call_operand.hbm [shape: f32[64,128], index: 1, kind: input, shape index: {}]
  %s2 = inlined_call_operand.hbm [shape: f32[8,128], index: 2, kind: output, shape index: {}]
  %s3 = sld [smem:[#allocation0]]
  $region18: #{tpu_custom_call.1} parent=0
    _
  %s5 = ssub.s32 1, %s3
  %s6 = scalar_select 0, %s5, %s3
  %s8 = sshll.u32 %s0, 4
  %s9 = int_to_ptr.hbm [resolvable:$true] %s8
  %11 = dma.hbm_to_smem %s9, 16, [#allocation5], [#allocation4]
  %13 = dma.done [#allocation4], 16
  %14 = sfence
  $region1: #{tpu_custom_call.1} parent=0
    #allocation6 [shape = 'u8[4096]{0}', space=vmem, size = 0x1000, scoped, tag = 'output window, operand 0, single buffered']
    #allocation7 [shape = 's32[1]{0}', space=sflag, size = 0x4, scoped, tag = 'scoped memory for tpu_custom_call.1']
    %15 = vsyncpa [#allocation7], 0
    %s16 = smul.u32 0, 8
    %p17 = scmp.eq.s32.totalorder 0, 0
    // Predicated region
    $region2: #{tpu_custom_call.1} parent=1 // pred_check
      %p18 = pneg %p17
    $region3: #{tpu_custom_call.1} parent=1 // pred_check_branch
      %20 = sbr.rel (%p18) target = $region5
    $region4: #{tpu_custom_call.1} parent=1 // pred_region
      // Predicated region
      $region6: #{tpu_custom_call.1} parent=4 // pred_check
        _
      $region7: #{tpu_custom_call.1} parent=4 // pred_check_branch
        %22 = sbr.rel target = $region9
      $region8: #{tpu_custom_call.1} parent=4 // pred_region
        %23 = sst [smem:[#allocation10]] [#allocation9]
        %24 = sst [smem:[#allocation11]] [#allocation8]
      $region9: #{tpu_custom_call.1} parent=4 // pred_fallthru
        _
      %26 = shalt.err (0)
      %s28 = sshll.u32 %s1, 4
      %s29 = int_to_ptr.hbm [resolvable:$true] %s28
      %s30 = sshll.u32 [#allocation2], 4
      %s31 = int_to_ptr.vmem [resolvable:$true] %s30
      %33 = dma.hbm_to_vmem [thread:$0]  %s29, 1024, %s31, [#allocation3]
      %s34 = smul.u32 64, 1
      %s35 = sshll.u32 %s34, 4
      %36 = dma.done [#allocation3], %s35
    $region5: #{tpu_custom_call.1} parent=1 // pred_fallthru
      _
    %s37 = sadd.s32 %s16, 0
    %s38 = sld [smem:[#allocation5 + %s37]]
    %s39 = sadd.s32 %s37, 1
    %s40 = sld [smem:[#allocation5 + %s39]]
    %s41 = sadd.s32 %s37, 2
    %s42 = sld [smem:[#allocation5 + %s41]]
    %s43 = sadd.s32 %s37, 3
    %s44 = sld [smem:[#allocation5 + %s43]]
    %s45 = sadd.s32 %s37, 4
    %s46 = sld [smem:[#allocation5 + %s45]]
    %s47 = sadd.s32 %s37, 5
    %s48 = sld [smem:[#allocation5 + %s47]]
    %s49 = sadd.s32 %s37, 6
    %s50 = sld [smem:[#allocation5 + %s49]]
    %s51 = sadd.s32 %s37, 7
    %s52 = sld [smem:[#allocation5 + %s51]]
    %s53 = scalar_lea.vmem [#allocation2], %s38
    %v54 = vld [vmem:[%s53] sm:$0x1]
    %s55 = scalar_lea.vmem [#allocation2], %s40
    %v56 = vld [vmem:[%s55] sm:$0x1]
    %s57 = scalar_lea.vmem [#allocation2], %s42
    %v58 = vld [vmem:[%s57] sm:$0x1]
    %s59 = scalar_lea.vmem [#allocation2], %s44
    %v60 = vld [vmem:[%s59] sm:$0x1]
    %s61 = scalar_lea.vmem [#allocation2], %s46
    %v62 = vld [vmem:[%s61] sm:$0x1]
    %s63 = scalar_lea.vmem [#allocation2], %s48
    %v64 = vld [vmem:[%s63] sm:$0x1]
    %s65 = scalar_lea.vmem [#allocation2], %s50
    %v66 = vld [vmem:[%s65] sm:$0x1]
    %s67 = scalar_lea.vmem [#allocation2], %s52
    %v68 = vld [vmem:[%s67] sm:$0x1]
    %v70 = vrot.slane %v56, 7
    %v73 = vrot.slane %v58, 6
    %v76 = vrot.slane %v60, 5
    %v79 = vrot.slane %v62, 4
    %v82 = vrot.slane %v64, 3
    %v85 = vrot.slane %v66, 2
    %v88 = vrot.slane %v68, 1
    %vm90 = vcmask 1040384
    %v91 = vsel %vm90, %v54, %v70
    %vm92 = vcmask 1041408
    %v93 = vsel %vm92, %v91, %v73
    %vm94 = vcmask 1042432
    %v95 = vsel %vm94, %v93, %v76
    %vm96 = vcmask 1043456
    %v97 = vsel %vm96, %v95, %v79
    %vm98 = vcmask 1044480
    %v99 = vsel %vm98, %v97, %v82
    %vm100 = vcmask 1045504
    %v101 = vsel %vm100, %v99, %v85
    %vm102 = vcmask 1046528
    %v103 = vsel %vm102, %v101, %v88
    %104 = vst [vmem:[#allocation6] sm:$0xff] %v103
    // Predicated region
    $region10: #{tpu_custom_call.1} parent=1 // pred_check
      _
    $region11: #{tpu_custom_call.1} parent=1 // pred_check_branch
      %106 = sbr.rel (0) target = $region13
    $region12: #{tpu_custom_call.1} parent=1 // pred_region
      %108 = vsyncadd [#allocation7], 0
      %s110 = sshll.u32 [#allocation6], 4
      %s111 = int_to_ptr.vmem [resolvable:$true] %s110
      %s112 = sshll.u32 %s2, 4
      %s113 = int_to_ptr.hbm [resolvable:$true] %s112
      %115 = dma.vmem_to_hbm [thread:$0]  %s111, 128, %s113, [#allocation7]
    $region13: #{tpu_custom_call.1} parent=1 // pred_fallthru
      _
    // Predicated region
    $region14: #{tpu_custom_call.1} parent=1 // pred_check
      _
    $region15: #{tpu_custom_call.1} parent=1 // pred_check_branch
      %117 = sbr.rel (0) target = $region17
    $region16: #{tpu_custom_call.1} parent=1 // pred_region
      %119 = dma.done [#allocation7], 128
    $region17: #{tpu_custom_call.1} parent=1 // pred_fallthru
      _
    %120 = vsyncpa [#allocation7], 1
  %121 = vsyncmov [#allocation3]
  %s122 = vpop.sfrf %121
  %p123 = scmp.eq.s32.totalorder %s122, 0
  %p124 = pneg %p123
  %126 = shalt.err (%p124)

</llo_original>
